<compile_context>
chip_gen: v6e
topology: v6e:2x2x1
jax: 0.10.0
libtpu: 0.0.40
codegen_flags: <defaults>
</compile_context>

<pallas_src>
import jax
import jax.numpy as jnp
from jax import lax
from jax.experimental import pallas as pl
from jax.experimental.pallas import tpu as pltpu

_LOG2E = 1.4426950408889634          # fold into q so softmax can use exp2
_STREAM_MASK_FILL = -1e30            # finite fill for the streaming kernel


def _vmem_capacity_bytes() -> int:
    """Physical VMEM per TensorCore; conservative fallback if query fails."""
    try:
        return int(pltpu.get_tpu_info().vmem_capacity_bytes)
    except Exception:
        return 64 * 1024 * 1024      # assume v7x-class (smallest) if unknown


# ---------------------------------------------------------------------------
# Kernel bodies
# ---------------------------------------------------------------------------
def _make_full_kernel(has_mask, return_attn, combined_scale, mxu_dtype):
    """Whole-Lk kernel: emits the full attn matrix (module default)."""

    def kernel(*refs):
        refs = list(refs)
        q_ref = refs.pop(0)
        k_ref = refs.pop(0)
        v_ref = refs.pop(0)
        mask_ref = refs.pop(0) if has_mask else None
        attn_ref = refs.pop(0) if return_attn else None
        out_ref = refs.pop(0)

        # Fold (1/scale)*log2(e) into q in f32, then cast operands for the MXU.
        q = (q_ref[0] * combined_scale).astype(mxu_dtype)   # (tq, Dk)
        k = k_ref[0].astype(mxu_dtype)                       # (Lk, Dk)
        v = v_ref[0].astype(mxu_dtype)                       # (Lk, Dv)

        # scores (in log2 domain) = q @ k^T, contract over Dk, accumulate f32.
        u = lax.dot_general(q, k, (((1,), (1,)), ((), ())),
                            preferred_element_type=jnp.float32)  # (tq, Lk)

        if has_mask:
            # masked_fill(mask, -inf): fully-masked rows -> NaN, like torch.
            u = jnp.where(mask_ref[0] != 0, -jnp.inf, u)

        # softmax over keys; exp2(u - umax) == exp(s - smax) exactly.
        u_max = jnp.max(u, axis=-1, keepdims=True)
        e = jnp.exp2(u - u_max)
        denom = jnp.sum(e, axis=-1, keepdims=True)
        attn = e * (1.0 / denom)                 # exact reciprocal on (tq,1)

        out = jnp.dot(attn.astype(mxu_dtype), v,
                      preferred_element_type=jnp.float32)

        if return_attn:
            attn_ref[0] = attn.astype(attn_ref.dtype)
        out_ref[0] = out.astype(out_ref.dtype)

    return kernel


def _make_flash_kernel(has_mask, combined_scale, mxu_dtype):
    """Streaming kernel (return_attn=False): online softmax over Lk tiles."""

    def kernel(*refs):
        refs = list(refs)
        q_ref = refs.pop(0)
        k_ref = refs.pop(0)
        v_ref = refs.pop(0)
        mask_ref = refs.pop(0) if has_mask else None
        out_ref = refs.pop(0)
        m_sc, l_sc, acc_sc = refs                 # VMEM accumulators

        ik = pl.program_id(2)

        @pl.when(ik == 0)
        def _():
            m_sc[...] = jnp.full(m_sc.shape, -jnp.inf, dtype=m_sc.dtype)
            l_sc[...] = jnp.zeros(l_sc.shape, dtype=l_sc.dtype)
            acc_sc[...] = jnp.zeros(acc_sc.shape, dtype=acc_sc.dtype)

        q = (q_ref[0] * combined_scale).astype(mxu_dtype)    # (tq, Dk)
        k = k_ref[0].astype(mxu_dtype)                        # (tk, Dk)
        v = v_ref[0].astype(mxu_dtype)                        # (tk, Dv)

        s = lax.dot_general(q, k, (((1,), (1,)), ((), ())),
                            preferred_element_type=jnp.float32)  # (tq, tk)
        if has_mask:
            # Finite fill keeps the online-softmax rescaling NaN-free.
            s = jnp.where(mask_ref[0] != 0, _STREAM_MASK_FILL, s)

        m_prev = m_sc[...]
        m_new = jnp.maximum(m_prev, jnp.max(s, axis=-1, keepdims=True))
        alpha = jnp.exp2(m_prev - m_new)
        p = jnp.exp2(s - m_new)
        l_sc[...] = alpha * l_sc[...] + jnp.sum(p, axis=-1, keepdims=True)
        acc_sc[...] = alpha * acc_sc[...] + jnp.dot(
            p.astype(mxu_dtype), v, preferred_element_type=jnp.float32)
        m_sc[...] = m_new

        @pl.when(ik == pl.num_programs(2) - 1)
        def _():
            out_ref[0] = (acc_sc[...] * (1.0 / l_sc[...])).astype(out_ref.dtype)

    return kernel


# ---------------------------------------------------------------------------
# Wrapper
# ---------------------------------------------------------------------------
def scaled_dot_product_attention(q, k, v, mask=None, *, scale,
                                 q_tile=None, k_tile=512,
                                 return_attn=True,
                                 mxu_dtype=jnp.bfloat16):
    """Pallas implementation of ScaledDotProductAttention.forward.

    mxu_dtype: operand dtype for both MXU matmuls (f32 accumulation).
               jnp.bfloat16 (default) for throughput, jnp.float32 for accuracy.
    return_attn=False selects the flash-style streaming kernel (no attn
    writeback, VMEM independent of Lk) and returns (None, output).
    """
    B, Lq, Dk = q.shape
    _, Lk, _ = k.shape
    _, _, Dv = v.shape
    has_mask = mask is not None
    combined_scale = (1.0 / float(scale)) * _LOG2E

    # --- generation-aware VMEM budget / tile sizes ---------------------------
    vmem_cap = _vmem_capacity_bytes()
    small_vmem = vmem_cap <= 96 * 1024 * 1024           # v7x-class (64 MiB/TC)
    if q_tile is None:
        q_tile = 128 if small_vmem else 512
    vmem_limit = (48 if small_vmem else 100) * 1024 * 1024

    tq = Lq if Lq <= q_tile else q_tile
    tk = Lk if Lk <= k_tile else k_tile

    inputs = [q, k, v]
    if has_mask:
        inputs.append(mask.astype(jnp.int8))             # 4x less HBM traffic

    itemsize = lambda d: jnp.dtype(d).itemsize
    bytes_accessed = (
        q.size * itemsize(q.dtype) + k.size * itemsize(k.dtype)
        + v.size * itemsize(v.dtype)
        + (B * Lq * Lk if has_mask else 0)                       # int8 mask
        + B * Lq * Dv * itemsize(q.dtype)                        # output
        + (B * Lq * Lk * itemsize(q.dtype) if return_attn else 0))
    cost = pl.CostEstimate(flops=2 * B * Lq * Lk * (Dk + Dv),
                           transcendentals=B * Lq * Lk,
                           bytes_accessed=int(bytes_accessed))

    if return_attn:
        # ----- full-attn kernel: grid (B, num_q_tiles), K/V resident --------
        kv_kwargs = {}
        if small_vmem and hasattr(pl, "Buffered"):
            # K/V only change on the batch axis; single-buffer them on v7x.
            kv_kwargs = {"pipeline_mode": pl.Buffered(1)}

        in_specs = [
            pl.BlockSpec((1, tq, Dk), lambda b, iq: (b, iq, 0)),
            pl.BlockSpec((1, Lk, Dk), lambda b, iq: (b, 0, 0), **kv_kwargs),
            pl.BlockSpec((1, Lk, Dv), lambda b, iq: (b, 0, 0), **kv_kwargs),
        ]
        if has_mask:
            in_specs.append(pl.BlockSpec((1, tq, Lk), lambda b, iq: (b, iq, 0)))

        out_shape = (
            jax.ShapeDtypeStruct((B, Lq, Lk), q.dtype),   # attn in input dtype
            jax.ShapeDtypeStruct((B, Lq, Dv), q.dtype),
        )
        out_specs = (
            pl.BlockSpec((1, tq, Lk), lambda b, iq: (b, iq, 0)),
            pl.BlockSpec((1, tq, Dv), lambda b, iq: (b, iq, 0)),
        )
        # Shard only the batch axis across TensorCores when B >= 2 so each
        # core keeps its K/V block resident (no duplicated HBM reads).
        dims = ("parallel", "arbitrary") if B >= 2 else ("parallel", "parallel")

        kernel = _make_full_kernel(has_mask, True, combined_scale, mxu_dtype)
        attn, out = pl.pallas_call(
            kernel,
            out_shape=out_shape,
            grid_spec=pltpu.PrefetchScalarGridSpec(
                num_scalar_prefetch=0,
                grid=(B, pl.cdiv(Lq, tq)),
                in_specs=in_specs,
                out_specs=out_specs,
            ),
            compiler_params=pltpu.CompilerParams(
                dimension_semantics=dims,
                vmem_limit_bytes=vmem_limit,
            ),
            cost_estimate=cost,
        )(*inputs)
        return attn, out

    # ----- streaming (flash-style) kernel: grid (B, num_q_tiles, num_k_tiles)
    in_specs = [
        pl.BlockSpec((1, tq, Dk), lambda b, iq, ik: (b, iq, 0)),
        pl.BlockSpec((1, tk, Dk), lambda b, iq, ik: (b, ik, 0)),
        pl.BlockSpec((1, tk, Dv), lambda b, iq, ik: (b, ik, 0)),
    ]
    if has_mask:
        in_specs.append(pl.BlockSpec((1, tq, tk), lambda b, iq, ik: (b, iq, ik)))

    out_shape = jax.ShapeDtypeStruct((B, Lq, Dv), q.dtype)
    out_specs = pl.BlockSpec((1, tq, Dv), lambda b, iq, ik: (b, iq, 0))

    kernel = _make_flash_kernel(has_mask, combined_scale, mxu_dtype)
    out = pl.pallas_call(
        kernel,
        out_shape=out_shape,
        grid_spec=pltpu.PrefetchScalarGridSpec(
            num_scalar_prefetch=0,
            grid=(B, pl.cdiv(Lq, tq), pl.cdiv(Lk, tk)),
            in_specs=in_specs,
            out_specs=out_specs,
            scratch_shapes=[
                pltpu.VMEM((tq, 1), jnp.float32),    # running max
                pltpu.VMEM((tq, 1), jnp.float32),    # running denom
                pltpu.VMEM((tq, Dv), jnp.float32),   # running output acc
            ],
        ),
        compiler_params=pltpu.CompilerParams(
            dimension_semantics=("parallel", "parallel", "arbitrary"),
            vmem_limit_bytes=vmem_limit,
        ),
        cost_estimate=cost,
    )(*inputs)
    return None, out


# ---------------------------------------------------------------------------
# Reference + self-test
# ---------------------------------------------------------------------------
def _reference(q, k, v, mask, scale):
    u = jnp.einsum("bqd,bkd->bqk", q, k,
                   precision=lax.Precision.HIGHEST) / scale
    if mask is not None:
        u = jnp.where(mask, -jnp.inf, u)
    attn = jax.nn.softmax(u, axis=2)
    out = jnp.einsum("bqk,bkd->bqd", attn, v,
                     precision=lax.Precision.HIGHEST)
    return attn, out


if __name__ == "__main__":
    key = jax.random.PRNGKey(0)
    kq, kk, kv, km = jax.random.split(key, 4)

    B, Lq, Lk, Dk, Dv = 2, 8, 8, 32, 32
    scale = float(Dk) ** 0.5

    q = jax.random.normal(kq, (B, Lq, Dk), dtype=jnp.float32)
    k = jax.random.normal(kk, (B, Lk, Dk), dtype=jnp.float32)
    v = jax.random.normal(kv, (B, Lk, Dv), dtype=jnp.float32)
    # Deterministic boolean mask; keep the diagonal unmasked so no row is
    # fully masked (torch would yield NaN there).
    mask = jax.random.bernoulli(km, p=0.25, shape=(B, Lq, Lk))
    mask = jnp.logical_and(mask, ~jnp.eye(Lq, Lk, dtype=bool)[None])

    attn_ref, out_ref = _reference(q, k, v, mask, scale)
    attn_ref_nm, out_ref_nm = _reference(q, k, v, None, scale)

    # 1) Default perf path (bf16 MXU operands), masked.
    attn, out = scaled_dot_product_attention(q, k, v, mask, scale=scale)
    jax.block_until_ready((attn, out))
    assert jnp.allclose(attn, attn_ref, atol=5e-2, rtol=5e-2)
    assert jnp.allclose(out, out_ref, atol=5e-2, rtol=5e-2)

    # 2) Exact path (f32 MXU operands), masked.
    attn_f, out_f = scaled_dot_product_attention(q, k, v, mask, scale=scale,
                                                 mxu_dtype=jnp.float32)
    jax.block_until_ready((attn_f, out_f))
    assert jnp.allclose(attn_f, attn_ref, atol=2e-2, rtol=2e-2)
    assert jnp.allclose(out_f, out_ref, atol=2e-2, rtol=2e-2)

    # 3) No-mask path (mask input dropped entirely).
    attn_nm, out_nm = scaled_dot_product_attention(q, k, v, None, scale=scale,
                                                   mxu_dtype=jnp.float32)
    jax.block_until_ready((attn_nm, out_nm))
    assert jnp.allclose(attn_nm, attn_ref_nm, atol=2e-2, rtol=2e-2)
    assert jnp.allclose(out_nm, out_ref_nm, atol=2e-2, rtol=2e-2)

    # 4) Streaming flash-style path (return_attn=False), masked + unmasked.
    _, out_fl = scaled_dot_product_attention(q, k, v, mask, scale=scale,
                                             return_attn=False)
    out_fl = jax.block_until_ready(out_fl)
    assert jnp.allclose(out_fl, out_ref, atol=5e-2, rtol=5e-2)

    _, out_fl_nm = scaled_dot_product_attention(q, k, v, None, scale=scale,
                                                return_attn=False,
                                                mxu_dtype=jnp.float32)
    out_fl_nm = jax.block_until_ready(out_fl_nm)
    assert jnp.allclose(out_fl_nm, out_ref_nm, atol=2e-2, rtol=2e-2)

    print("KERNEL_OK")
</pallas_src>

<mosaic_0001>
module attributes {stable_mosaic.version = 11 : i64} {
  func.func @kernel(%arg0: i32, %arg1: i32, %arg2: memref<1x8x32xf32, #tpu.memory_space<vmem>>, %arg3: memref<1x8x32xf32, #tpu.memory_space<vmem>>, %arg4: memref<1x8x32xf32, #tpu.memory_space<vmem>>, %arg5: memref<1x8x8xi8, #tpu.memory_space<vmem>>, %arg6: memref<1x8x8xf32, #tpu.memory_space<vmem>>, %arg7: memref<1x8x32xf32, #tpu.memory_space<vmem>>) attributes {dimension_semantics = [#tpu.dimension_semantics<parallel>, #tpu.dimension_semantics<arbitrary>], iteration_bounds = array<i64: 2, 1>, scalar_prefetch = 0 : i64, scratch_operands = 0 : i64, tpu.core_type = #tpu.core_type<tc>, window_params = [{transform_indices = @transform_0, window_bounds = array<i64: 1, 8, 32>}, {pipeline_mode = #tpu.pipeline_mode<synchronous>, transform_indices = @transform_1, window_bounds = array<i64: 1, 8, 32>}, {pipeline_mode = #tpu.pipeline_mode<synchronous>, transform_indices = @transform_2, window_bounds = array<i64: 1, 8, 32>}, {transform_indices = @transform_3, window_bounds = array<i64: 1, 8, 8>}, {transform_indices = @transform_4, window_bounds = array<i64: 1, 8, 8>}, {transform_indices = @transform_5, window_bounds = array<i64: 1, 8, 32>}]} {
    %c0 = arith.constant 0 : index
    %c0_0 = arith.constant 0 : index
    %c0_1 = arith.constant 0 : index
    %0 = vector.load %arg2[%c0, %c0_0, %c0_1] : memref<1x8x32xf32, #tpu.memory_space<vmem>>, vector<1x8x32xf32>
    %1 = vector.shape_cast %0 : vector<1x8x32xf32> to vector<8x32xf32>
    %cst = arith.constant 0.255034864 : f32
    %2 = vector.broadcast %cst : f32 to vector<8x32xf32>
    %3 = arith.mulf %1, %2 : vector<8x32xf32>
    %4 = arith.truncf %3 : vector<8x32xf32> to vector<8x32xbf16>
    %c0_2 = arith.constant 0 : index
    %c0_3 = arith.constant 0 : index
    %c0_4 = arith.constant 0 : index
    %5 = vector.load %arg3[%c0_2, %c0_3, %c0_4] : memref<1x8x32xf32, #tpu.memory_space<vmem>>, vector<1x8x32xf32>
    %6 = vector.shape_cast %5 : vector<1x8x32xf32> to vector<8x32xf32>
    %7 = arith.truncf %6 : vector<8x32xf32> to vector<8x32xbf16>
    %c0_5 = arith.constant 0 : index
    %c0_6 = arith.constant 0 : index
    %c0_7 = arith.constant 0 : index
    %8 = vector.load %arg4[%c0_5, %c0_6, %c0_7] : memref<1x8x32xf32, #tpu.memory_space<vmem>>, vector<1x8x32xf32>
    %9 = vector.shape_cast %8 : vector<1x8x32xf32> to vector<8x32xf32>
    %10 = arith.truncf %9 : vector<8x32xf32> to vector<8x32xbf16>
    %cst_8 = arith.constant dense<0.000000e+00> : vector<8x8xf32>
    %11 = tpu.matmul %4, %7, %cst_8 {dimension_numbers = #tpu.dot_dimension_numbers<[1], [1], [0], [0], [0, 0, 1, 0], [], []>} : vector<8x32xbf16>, vector<8x32xbf16>, vector<8x8xf32> -> vector<8x8xf32>
    %c0_9 = arith.constant 0 : index
    %c0_10 = arith.constant 0 : index
    %c0_11 = arith.constant 0 : index
    %12 = vector.load %arg5[%c0_9, %c0_10, %c0_11] : memref<1x8x8xi8, #tpu.memory_space<vmem>>, vector<1x8x8xi8>
    %13 = vector.shape_cast %12 : vector<1x8x8xi8> to vector<8x8xi8>
    %c0_i8 = arith.constant 0 : i8
    %14 = vector.broadcast %c0_i8 : i8 to vector<8x8xi8>
    %15 = arith.cmpi ne, %13, %14 : vector<8x8xi8>
    %cst_12 = arith.constant 0xFF800000 : f32
    %16 = vector.broadcast %cst_12 : f32 to vector<8x8xf32>
    %17 = arith.select %15, %16, %11 : vector<8x8xi1>, vector<8x8xf32>
    %cst_13 = arith.constant dense<0xFF800000> : vector<8xf32>
    %18 = vector.multi_reduction <maximumf>, %17, %cst_13 [1] : vector<8x8xf32> to vector<8xf32>
    %19 = vector.shape_cast %18 : vector<8xf32> to vector<8x1xf32>
    %20 = vector.broadcast %19 : vector<8x1xf32> to vector<8x8xf32>
    %21 = arith.subf %17, %20 : vector<8x8xf32>
    %22 = math.exp2 %21 : vector<8x8xf32>
    %cst_14 = arith.constant dense<0.000000e+00> : vector<8xf32>
    %23 = vector.multi_reduction <add>, %22, %cst_14 [1] : vector<8x8xf32> to vector<8xf32>
    %24 = vector.shape_cast %23 : vector<8xf32> to vector<8x1xf32>
    %cst_15 = arith.constant 1.000000e+00 : f32
    %25 = vector.broadcast %cst_15 : f32 to vector<8x1xf32>
    %26 = arith.divf %25, %24 : vector<8x1xf32>
    %27 = vector.broadcast %26 : vector<8x1xf32> to vector<8x8xf32>
    %28 = arith.mulf %22, %27 : vector<8x8xf32>
    %29 = arith.truncf %28 : vector<8x8xf32> to vector<8x8xbf16>
    %cst_16 = arith.constant dense<0.000000e+00> : vector<8x32xf32>
    %30 = tpu.matmul %29, %10, %cst_16 {dimension_numbers = #tpu.dot_dimension_numbers<[1], [0], [0], [1], [0, 0, 1, 1], [], []>} : vector<8x8xbf16>, vector<8x32xbf16>, vector<8x32xf32> -> vector<8x32xf32>
    %c0_17 = arith.constant 0 : index
    %c0_18 = arith.constant 0 : index
    %c0_19 = arith.constant 0 : index
    %31 = vector.load %arg6[%c0_17, %c0_18, %c0_19] : memref<1x8x8xf32, #tpu.memory_space<vmem>>, vector<1x8x8xf32>
    %32 = vector.shape_cast %31 : vector<1x8x8xf32> to vector<8x8xf32>
    %33 = vector.shape_cast %28 : vector<8x8xf32> to vector<1x8x8xf32>
    tpu.vector_store %arg6[%c0_17, %c0_18, %c0_19], %33 {strides = array<i32>} : memref<1x8x8xf32, #tpu.memory_space<vmem>>, vector<1x8x8xf32>,
    %c0_20 = arith.constant 0 : index
    %c0_21 = arith.constant 0 : index
    %c0_22 = arith.constant 0 : index
    %34 = vector.load %arg7[%c0_20, %c0_21, %c0_22] : memref<1x8x32xf32, #tpu.memory_space<vmem>>, vector<1x8x32xf32>
    %35 = vector.shape_cast %34 : vector<1x8x32xf32> to vector<8x32xf32>
    %36 = vector.shape_cast %30 : vector<8x32xf32> to vector<1x8x32xf32>
    tpu.vector_store %arg7[%c0_20, %c0_21, %c0_22], %36 {strides = array<i32>} : memref<1x8x32xf32, #tpu.memory_space<vmem>>, vector<1x8x32xf32>,
    return
  }
  func.func @transform_0(%arg0: i32, %arg1: i32) -> (i32, i32, i32) {
    %c0_i32 = arith.constant 0 : i32
    %c0_i32_0 = arith.constant 0 : i32
    return %arg0, %arg1, %c0_i32 : i32, i32, i32
  }
  func.func @transform_1(%arg0: i32, %arg1: i32) -> (i32, i32, i32) {
    %c0_i32 = arith.constant 0 : i32
    %c0_i32_0 = arith.constant 0 : i32
    %c0_i32_1 = arith.constant 0 : i32
    return %arg0, %c0_i32, %c0_i32_0 : i32, i32, i32
  }
  func.func @transform_2(%arg0: i32, %arg1: i32) -> (i32, i32, i32) {
    %c0_i32 = arith.constant 0 : i32
    %c0_i32_0 = arith.constant 0 : i32
    %c0_i32_1 = arith.constant 0 : i32
    return %arg0, %c0_i32, %c0_i32_0 : i32, i32, i32
  }
  func.func @transform_3(%arg0: i32, %arg1: i32) -> (i32, i32, i32) {
    %c0_i32 = arith.constant 0 : i32
    %c0_i32_0 = arith.constant 0 : i32
    return %arg0, %arg1, %c0_i32 : i32, i32, i32
  }
  func.func @transform_4(%arg0: i32, %arg1: i32) -> (i32, i32, i32) {
    %c0_i32 = arith.constant 0 : i32
    %c0_i32_0 = arith.constant 0 : i32
    return %arg0, %arg1, %c0_i32 : i32, i32, i32
  }
  func.func @transform_5(%arg0: i32, %arg1: i32) -> (i32, i32, i32) {
    %c0_i32 = arith.constant 0 : i32
    %c0_i32_0 = arith.constant 0 : i32
    return %arg0, %arg1, %c0_i32 : i32, i32, i32
  }
}

</mosaic_0001>

<llo_original>
// kernel: tpu_custom_call.1
$region0: #{tpu_custom_call.1}
  #allocation0 [shape = 'u32[]', space=smem, size = 0x4, offset = 0x4, fixed_abs, tag = 'smem constant byte address 0x4 - core index']
  #allocation1 [shape = 'u32[144,128]{1,0:T(1,128)}', space=vmem, size = 0x12000, scoped, tag = 'internal scratch']
  %s0 = inlined_call_operand.hbm [shape: f32[2,8,32], index: 0, kind: input, shape index: {}]
  %s1 = inlined_call_operand.hbm [shape: f32[2,8,32], index: 1, kind: input, shape index: {}]
  %s2 = inlined_call_operand.hbm [shape: f32[2,8,32], index: 2, kind: input, shape index: {}]
  %s3 = inlined_call_operand.vmem [shape: s8[2,8,8], index: 3, kind: input, shape index: {}]
  %s4 = inlined_call_operand.hbm [shape: f32[2,8,8], index: 4, kind: output, shape index: {0}]
  %s5 = inlined_call_operand.hbm [shape: f32[2,8,32], index: 5, kind: output, shape index: {1}]
  %6 = xla_tuple %s4, %s5
  %s7 = sld [smem:[#allocation0]]
  $region69: #{tpu_custom_call.1} parent=0
    _
  %s9 = ssub.s32 1, %s7
  %s10 = scalar_select 0, %s9, %s7
  $region1: #{tpu_custom_call.1} parent=0
    #allocation2 [shape = 'u8[8192]{0}', space=vmem, size = 0x2000, scoped, tag = 'input window, operand 0']
    #allocation3 [shape = 's32[2]{0}', space=sflag, size = 0x8, scoped, tag = 'scoped memory for tpu_custom_call.1']
    #allocation4 [shape = 's32[2]{0}', space=sflag, size = 0x8, scoped, tag = 'scoped memory for tpu_custom_call.1']
    #allocation5 [shape = 'u8[4096]{0}', space=vmem, size = 0x1000, scoped, tag = 'input window, operand 1, single buffered']
    #allocation6 [shape = 's32[1]{0}', space=sflag, size = 0x4, scoped, tag = 'scoped memory for tpu_custom_call.1']
    #allocation7 [shape = 'u8[4096]{0}', space=vmem, size = 0x1000, scoped, tag = 'input window, operand 2, single buffered']
    #allocation8 [shape = 'u8[8192]{0}', space=vmem, size = 0x2000, scoped, tag = 'output window, operand 0']
    #allocation9 [shape = 'u8[8192]{0}', space=vmem, size = 0x2000, scoped, tag = 'output window, operand 1']
    #allocation10 [shape = 's32[2]{0}', space=sflag, size = 0x8, scoped, tag = 'scoped memory for tpu_custom_call.1']
    %11 = vsyncpa [#allocation3], 0
    %s12 = scalar_lea.sflag [#allocation3], 1
    %13 = vsyncpa %s12, 0
    %14 = vsyncpa [#allocation6], 0
    %15 = vsyncpa [#allocation4], 0
    %s16 = scalar_lea.sflag [#allocation4], 1
    %17 = vsyncpa %s16, 0
    %18 = vsyncpa [#allocation10], 0
    %s19 = scalar_lea.sflag [#allocation10], 1
    %20 = vsyncpa %s19, 0
    loop: start=0, step=1, limit=4
    $region2: #{tpu_custom_call.1} parent=1 // loop_pre_header
      _
    $region3: #{tpu_custom_call.1} parent=1 // loop_header
      %s22 = sphi 0, %s26
      %p23 = scmp.ge.s32.totalorder %s22, 4
      %s29 = sphi 0, %s41
      %s30 = sphi 0, %s37
      %s31 = sphi 0, %s29
      %s32 = sphi 0, %s30
      %s33 = sphi 0, %s31
      %s34 = sphi 0, %s32
      %s46 = sphi 0, %s48
      %s49 = sphi 0, %s46
      %s50 = sphi 0, %s49
      %s66 = sphi 0, %s50
      %s72 = sphi 0, %s74
      %s75 = sphi 0, %s72
      %s76 = sphi 0, %s75
      %s92 = sphi 0, %s76
      %s98 = sphi 0, %s100
      %s101 = sphi 0, %s98
      %s102 = sphi 0, %s101
      %s118 = sphi 0, %s102
      %s126 = sphi 0, %s128
      %s129 = sphi 0, %s126
      %s130 = sphi 0, %s129
      %s146 = sphi 0, %s130
      %s154 = sphi 0, %s156
      %s157 = sphi 0, %s154
      %s158 = sphi 0, %s157
      %s174 = sphi 0, %s158
      %s182 = sphi 0, %s184
      %s185 = sphi 0, %s182
      %s186 = sphi 0, %s185
      %s202 = sphi 0, %s186
    $region4: #{tpu_custom_call.1} parent=1 // loop_header_branch
      %25 = sbr.rel (%p23) target = $region8
    $region5: #{tpu_custom_call.1} parent=1 // loop_body
      %s27 = ssub.s32 %s22, 1
      %s28 = ssub.s32 %s22, 2
      %s35 = sadd.s32 1, %s30
      %p36 = scmp.ge.s32.totalorder %s35, 1
      %s37 = scalar_select %p36, 0, %s35
      %s38 = sadd.s32 1, %s29
      %s39 = scalar_select %p36, %s38, %s29
      %p40 = scmp.ge.s32.totalorder %s39, 2
      %s41 = scalar_select %p40, 0, %s39
      %s42 = ssub.s32 %s29, %s41
      %s43 = ssub.s32 %s30, %s37
      %s44 = sor.u32 %s42, %s43
      %p45 = scmp.eq.s32.totalorder %s44, 0
      %s47 = sadd.s32 %s46, 1
      %s48 = scalar_select %p45, %s46, %s47
      %p51 = pneg %p45
      %p52 = scmp.eq.s32.totalorder %s22, 1
      %p53 = por %p51, %p52
      %p54 = scmp.ne.s32.totalorder %s46, %s49
      %p55 = scmp.eq.s32.totalorder %s22, 0
      %p56 = por %p54, %p55
      %p57 = scmp.ne.s32.totalorder %s46, %s49
      %p58 = scmp.eq.s32.totalorder %s27, 1
      %p59 = por %p57, %p58
      %p60 = scmp.ne.s32.totalorder %s49, %s50
      %p61 = scmp.eq.s32.totalorder %s27, 0
      %p62 = por %p60, %p61
      %p63 = scmp.ne.s32.totalorder %s49, %s50
      %p64 = scmp.eq.s32.totalorder %s28, 1
      %p65 = por %p63, %p64
      %p67 = scmp.ne.s32.totalorder %s50, %s66
      %p68 = scmp.eq.s32.totalorder %s28, 0
      %p69 = por %p67, %p68
      %s70 = ssub.s32 %s29, %s41
      %p71 = scmp.eq.s32.totalorder %s70, 0
      %s73 = sadd.s32 %s72, 1
      %s74 = scalar_select %p71, %s72, %s73
      %p77 = pneg %p71
      %p78 = scmp.eq.s32.totalorder %s22, 1
      %p79 = por %p77, %p78
      %p80 = scmp.ne.s32.totalorder %s72, %s75
      %p81 = scmp.eq.s32.totalorder %s22, 0
      %p82 = por %p80, %p81
      %p83 = scmp.ne.s32.totalorder %s72, %s75
      %p84 = scmp.eq.s32.totalorder %s27, 1
      %p85 = por %p83, %p84
      %p86 = scmp.ne.s32.totalorder %s75, %s76
      %p87 = scmp.eq.s32.totalorder %s27, 0
      %p88 = por %p86, %p87
      %p89 = scmp.ne.s32.totalorder %s75, %s76
      %p90 = scmp.eq.s32.totalorder %s28, 1
      %p91 = por %p89, %p90
      %p93 = scmp.ne.s32.totalorder %s76, %s92
      %p94 = scmp.eq.s32.totalorder %s28, 0
      %p95 = por %p93, %p94
      %s96 = ssub.s32 %s29, %s41
      %p97 = scmp.eq.s32.totalorder %s96, 0
      %s99 = sadd.s32 %s98, 1
      %s100 = scalar_select %p97, %s98, %s99
      %p103 = pneg %p97
      %p104 = scmp.eq.s32.totalorder %s22, 1
      %p105 = por %p103, %p104
      %p106 = scmp.ne.s32.totalorder %s98, %s101
      %p107 = scmp.eq.s32.totalorder %s22, 0
      %p108 = por %p106, %p107
      %p109 = scmp.ne.s32.totalorder %s98, %s101
      %p110 = scmp.eq.s32.totalorder %s27, 1
      %p111 = por %p109, %p110
      %p112 = scmp.ne.s32.totalorder %s101, %s102
      %p113 = scmp.eq.s32.totalorder %s27, 0
      %p114 = por %p112, %p113
      %p115 = scmp.ne.s32.totalorder %s101, %s102
      %p116 = scmp.eq.s32.totalorder %s28, 1
      %p117 = por %p115, %p116
      %p119 = scmp.ne.s32.totalorder %s102, %s118
      %p120 = scmp.eq.s32.totalorder %s28, 0
      %p121 = por %p119, %p120
      %s122 = ssub.s32 %s29, %s41
      %s123 = ssub.s32 %s30, %s37
      %s124 = sor.u32 %s122, %s123
      %p125 = scmp.eq.s32.totalorder %s124, 0
      %s127 = sadd.s32 %s126, 1
      %s128 = scalar_select %p125, %s126, %s127
      %p131 = pneg %p125
      %p132 = scmp.eq.s32.totalorder %s22, 1
      %p133 = por %p131, %p132
      %p134 = scmp.ne.s32.totalorder %s126, %s129
      %p135 = scmp.eq.s32.totalorder %s22, 0
      %p136 = por %p134, %p135
      %p137 = scmp.ne.s32.totalorder %s126, %s129
      %p138 = scmp.eq.s32.totalorder %s27, 1
      %p139 = por %p137, %p138
      %p140 = scmp.ne.s32.totalorder %s129, %s130
      %p141 = scmp.eq.s32.totalorder %s27, 0
      %p142 = por %p140, %p141
      %p143 = scmp.ne.s32.totalorder %s129, %s130
      %p144 = scmp.eq.s32.totalorder %s28, 1
      %p145 = por %p143, %p144
      %p147 = scmp.ne.s32.totalorder %s130, %s146
      %p148 = scmp.eq.s32.totalorder %s28, 0
      %p149 = por %p147, %p148
      %s150 = ssub.s32 %s29, %s41
      %s151 = ssub.s32 %s30, %s37
      %s152 = sor.u32 %s150, %s151
      %p153 = scmp.eq.s32.totalorder %s152, 0
      %s155 = sadd.s32 %s154, 1
      %s156 = scalar_select %p153, %s154, %s155
      %p159 = pneg %p153
      %p160 = scmp.eq.s32.totalorder %s22, 1
      %p161 = por %p159, %p160
      %p162 = scmp.ne.s32.totalorder %s154, %s157
      %p163 = scmp.eq.s32.totalorder %s22, 0
      %p164 = por %p162, %p163
      %p165 = scmp.ne.s32.totalorder %s154, %s157
      %p166 = scmp.eq.s32.totalorder %s27, 1
      %p167 = por %p165, %p166
      %p168 = scmp.ne.s32.totalorder %s157, %s158
      %p169 = scmp.eq.s32.totalorder %s27, 0
      %p170 = por %p168, %p169
      %p171 = scmp.ne.s32.totalorder %s157, %s158
      %p172 = scmp.eq.s32.totalorder %s28, 1
      %p173 = por %p171, %p172
      %p175 = scmp.ne.s32.totalorder %s158, %s174
      %p176 = scmp.eq.s32.totalorder %s28, 0
      %p177 = por %p175, %p176
      %s178 = ssub.s32 %s29, %s41
      %s179 = ssub.s32 %s30, %s37
      %s180 = sor.u32 %s178, %s179
      %p181 = scmp.eq.s32.totalorder %s180, 0
      %s183 = sadd.s32 %s182, 1
      %s184 = scalar_select %p181, %s182, %s183
      %p187 = pneg %p181
      %p188 = scmp.eq.s32.totalorder %s22, 1
      %p189 = por %p187, %p188
      %p190 = scmp.ne.s32.totalorder %s182, %s185
      %p191 = scmp.eq.s32.totalorder %s22, 0
      %p192 = por %p190, %p191
      %p193 = scmp.ne.s32.totalorder %s182, %s185
      %p194 = scmp.eq.s32.totalorder %s27, 1
      %p195 = por %p193, %p194
      %p196 = scmp.ne.s32.totalorder %s185, %s186
      %p197 = scmp.eq.s32.totalorder %s27, 0
      %p198 = por %p196, %p197
      %p199 = scmp.ne.s32.totalorder %s185, %s186
      %p200 = scmp.eq.s32.totalorder %s28, 1
      %p201 = por %p199, %p200
      %p203 = scmp.ne.s32.totalorder %s186, %s202
      %p204 = scmp.eq.s32.totalorder %s28, 0
      %p205 = por %p203, %p204
      %p206 = scmp.le.s32.totalorder 1, %s22
      %p207 = scmp.lt.s32.totalorder %s22, 3
      %p208 = pnand %p206, %p207
      %p209 = pneg %p208
      // Predicated region
      $region9: #{tpu_custom_call.1} parent=5 // pred_check
        _
      $region10: #{tpu_custom_call.1} parent=5 // pred_check_branch
        %211 = sbr.rel (%p208) target = $region12
      $region11: #{tpu_custom_call.1} parent=5 // pred_region
        %s212 = ssub.s32 %s22, 1
        // Predicated region
        $region13: #{tpu_custom_call.1} parent=11 // pred_check
          %p213 = pneg %p88
        $region14: #{tpu_custom_call.1} parent=11 // pred_check_branch
          %215 = sbr.rel (%p213) target = $region16
        $region15: #{tpu_custom_call.1} parent=11 // pred_region
          %s217 = ssub.s32 128, 128
          %218 = vsyncadd [#allocation6], %s217
          %s219 = smul.addr %s31, 128
          %s220 = scalar_lea.hbm %s1, %s219
          %s222 = sshll.u32 [#allocation5], 4
          %s223 = int_to_ptr.vmem [resolvable:$true] %s222
          %225 = dma.hbm_to_vmem [thread:$0]  %s220, 128, %s223, [#allocation6]
        $region16: #{tpu_custom_call.1} parent=11 // pred_fallthru
          _
        // Predicated region
        $region17: #{tpu_custom_call.1} parent=11 // pred_check
          %p226 = pneg %p114
        $region18: #{tpu_custom_call.1} parent=11 // pred_check_branch
          %228 = sbr.rel (%p226) target = $region20
        $region19: #{tpu_custom_call.1} parent=11 // pred_region
          %s230 = ssub.s32 128, 128
          %231 = vsyncadd [#allocation6], %s230
          %s232 = smul.addr %s31, 128
          %s233 = scalar_lea.hbm %s2, %s232
          %s235 = sshll.u32 [#allocation7], 4
          %s236 = int_to_ptr.vmem [resolvable:$true] %s235
          %238 = dma.hbm_to_vmem [thread:$0]  %s233, 128, %s236, [#allocation6]
        $region20: #{tpu_custom_call.1} parent=11 // pred_fallthru
          _
      $region12: #{tpu_custom_call.1} parent=5 // pred_fallthru
        _
      %p239 = scmp.lt.s32.totalorder %s22, 2
      // Predicated region
      $region21: #{tpu_custom_call.1} parent=5 // pred_check
        %p240 = pneg %p239
      $region22: #{tpu_custom_call.1} parent=5 // pred_check_branch
        %242 = sbr.rel (%p240) target = $region24
      $region23: #{tpu_custom_call.1} parent=5 // pred_region
        // Predicated region
        $region25: #{tpu_custom_call.1} parent=23 // pred_check
          %p243 = pneg %p56
        $region26: #{tpu_custom_call.1} parent=23 // pred_check_branch
          %245 = sbr.rel (%p243) target = $region28
        $region27: #{tpu_custom_call.1} parent=23 // pred_region
          %s246 = sand.u32 %s46, 1
          %s247 = scalar_lea.sflag [#allocation3], %s246
          %s248 = sand.u32 %s46, 1
          %s249 = smul.addr %s248, 8
          %s250 = scalar_lea.vmem [#allocation2], %s249
          %s252 = ssub.s32 128, 128
          %253 = vsyncadd %s247, %s252
          %s254 = sadd.s32 %s30, %s29
          %s255 = smul.addr %s254, 128
          %s256 = scalar_lea.hbm %s0, %s255
          %s258 = sshll.u32 %s250, 4
          %s259 = int_to_ptr.vmem [resolvable:$true] %s258
          %261 = dma.hbm_to_vmem [thread:$0]  %s256, 128, %s259, %s247
        $region28: #{tpu_custom_call.1} parent=23 // pred_fallthru
          _
        // Predicated region
        $region29: #{tpu_custom_call.1} parent=23 // pred_check
          %p262 = pneg %p136
        $region30: #{tpu_custom_call.1} parent=23 // pred_check_branch
          %264 = sbr.rel (%p262) target = $region32
        $region31: #{tpu_custom_call.1} parent=23 // pred_region
          %p265 = scmp.lt.s32.totalorder %s29, 1
          %s266 = scalar_select %p265, %s29, 1
          %p267 = scmp.lt.s32.totalorder %s30, 0
          %s268 = scalar_select %p267, %s30, 0
          %s269 = sadd.s32 %s268, %s266
          %s270 = smul.addr %s269, 2
          %s271 = scalar_lea.vmem %s3, %s270
        $region32: #{tpu_custom_call.1} parent=23 // pred_fallthru
          _
      $region24: #{tpu_custom_call.1} parent=5 // pred_fallthru
        _
      %p272 = scmp.le.s32.totalorder 1, %s22
      %p273 = scmp.lt.s32.totalorder %s22, 3
      %p274 = pnand %p272, %p273
      %p275 = pneg %p274
      // Predicated region
      $region33: #{tpu_custom_call.1} parent=5 // pred_check
        _
      $region34: #{tpu_custom_call.1} parent=5 // pred_check_branch
        %277 = sbr.rel (%p274) target = $region36
      $region35: #{tpu_custom_call.1} parent=5 // pred_region
        %s278 = ssub.s32 %s22, 1
        %s279 = sand.u32 %s49, 1
        %s280 = scalar_lea.sflag [#allocation3], %s279
        %s281 = sand.u32 %s49, 1
        %s282 = smul.addr %s281, 8
        %s283 = scalar_lea.vmem [#allocation2], %s282
        // Predicated region
        $region37: #{tpu_custom_call.1} parent=35 // pred_check
          %p284 = pneg %p62
        $region38: #{tpu_custom_call.1} parent=35 // pred_check_branch
          %286 = sbr.rel (%p284) target = $region40
        $region39: #{tpu_custom_call.1} parent=35 // pred_region
          %287 = dma.done %s280, 128
        $region40: #{tpu_custom_call.1} parent=35 // pred_fallthru
          _
        // Predicated region
        $region41: #{tpu_custom_call.1} parent=35 // pred_check
          %p288 = pneg %p88
        $region42: #{tpu_custom_call.1} parent=35 // pred_check_branch
          %290 = sbr.rel (%p288) target = $region44
        $region43: #{tpu_custom_call.1} parent=35 // pred_region
          %291 = dma.done [#allocation6], 128
        $region44: #{tpu_custom_call.1} parent=35 // pred_fallthru
          _
        // Predicated region
        $region45: #{tpu_custom_call.1} parent=35 // pred_check
          %p292 = pneg %p114
        $region46: #{tpu_custom_call.1} parent=35 // pred_check_branch
          %294 = sbr.rel (%p292) target = $region48
        $region47: #{tpu_custom_call.1} parent=35 // pred_region
          %295 = dma.done [#allocation6], 128
        $region48: #{tpu_custom_call.1} parent=35 // pred_fallthru
          _
        %s296 = sand.u32 %s49, 1
        %s297 = scalar_lea.sflag [#allocation3], %s296
        %s298 = sand.u32 %s49, 1
        %s299 = smul.addr %s298, 8
        %s300 = scalar_lea.vmem [#allocation2], %s299
        %p301 = pneg %p62
        %p302 = pneg %p59
        %p303 = pneg %p88
        %p304 = pneg %p85
        %p305 = pneg %p114
        %p306 = pneg %p111
        %p307 = scmp.lt.s32.totalorder %s31, 1
        %s308 = scalar_select %p307, %s31, 1
        %p309 = scmp.lt.s32.totalorder %s32, 0
        %s310 = scalar_select %p309, %s32, 0
        %s311 = sadd.s32 %s310, %s308
        %s312 = smul.addr %s311, 2
        %s313 = scalar_lea.vmem %s3, %s312
        %p314 = pneg %p142
        %p315 = pneg %p139
        %p316 = pneg %p170
        %p317 = pneg %p167
        %s318 = sand.u32 %s157, 1
        %s319 = scalar_lea.sflag [#allocation4], %s318
        %s320 = sand.u32 %s157, 1
        %s321 = smul.addr %s320, 8
        %s322 = scalar_lea.vmem [#allocation8], %s321
        %p323 = pneg %p198
        %p324 = pneg %p195
        %s325 = sand.u32 %s185, 1
        %s326 = scalar_lea.sflag [#allocation10], %s325
        %s327 = sand.u32 %s185, 1
        %s328 = smul.addr %s327, 8
        %s329 = scalar_lea.vmem [#allocation9], %s328
        %p330 = scmp.lt.s32.totalorder %s31, 1
        %s331 = scalar_select %p330, %s31, 1
        %p332 = scmp.lt.s32.totalorder %s32, 0
        %s333 = scalar_select %p332, %s32, 0
        %s334 = sadd.s32 %s333, %s331
        %s335 = smul.addr %s334, 2
        %s336 = scalar_lea.vmem %s3, %s335
        %v340 = vld [vmem:[%s283] sm:$0xff]
        %v341 = vmul.f32 %v340, 0.25503486
        %v342 = vpack.c.bf16 %v341, %v341
        %v343 = vld [vmem:[#allocation5] sm:$0xff]
        %v344 = vpack.c.bf16 %v343, %v343
        %v345 = vld [vmem:[#allocation7] sm:$0xff]
        %v346 = vpack.c.bf16 %v345, %v345
        %vm347 = vcmask 261120
        %v349 = vsel %vm347, %v342, 0
        %v352 = vsel %vm347, %v344, 0
        %354 = vmatprep.subr.bf16.mxu0 0
        %355 = vmatpush1.bf16.xpose.msra.mxu0 0
        %356 = vmatprep.subr.bf16.mxu0 0
        %357 = vmatpush1.bf16.xpose.msra.mxu0 0
        %358 = vmatprep.subr.bf16.mxu0 0
        %359 = vmatpush1.bf16.xpose.msra.mxu0 0
        %360 = vmatprep.subr.bf16.mxu0 0
        %361 = vmatpush1.bf16.xpose.msra.mxu0 0
        %362 = vmatprep.subr.bf16.mxu0 0
        %363 = vmatpush1.bf16.xpose.msra.mxu0 0
        %364 = vmatprep.subr.bf16.mxu0 0
        %365 = vmatpush1.bf16.xpose.msra.mxu0 0
        %366 = vmatprep.subr.bf16.mxu0 0
        %367 = vmatpush1.bf16.xpose.msra.mxu0 0
        %368 = vmatprep.subr.bf16.mxu0 0
        %369 = vmatpush1.bf16.xpose.msra.mxu0 %v352
        %370 = vmatprep.subr.bf16.mxu0 0
        %371 = vmatpush2.bf16.xpose.msra.mxu0 0
        %372 = vmatprep.subr.bf16.mxu0 0
        %373 = vmatpush2.bf16.xpose.msra.mxu0 0
        %374 = vmatprep.subr.bf16.mxu0 0
        %375 = vmatpush2.bf16.xpose.msra.mxu0 0
        %376 = vmatprep.subr.bf16.mxu0 0
        %377 = vmatpush2.bf16.xpose.msra.mxu0 0
        %378 = vmatprep.subr.bf16.mxu0 0
        %379 = vmatpush2.bf16.xpose.msra.mxu0 0
        %380 = vmatprep.subr.bf16.mxu0 0
        %381 = vmatpush2.bf16.xpose.msra.mxu0 0
        %382 = vmatprep.subr.bf16.mxu0 0
        %383 = vmatpush2.bf16.xpose.msra.mxu0 0
        %384 = vmatprep.subr.bf16.mxu0 0
        %385 = vmatpush2.bf16.xpose.msra.mxu0 0
        %386 = vmatprep.mubr.bf16.mxu0 0
        %387 = vmatmul.mubr.bf16.gmra.mxu0 %v349
        %v388 = vpop.f32.mrf.mxu0
        %v389 = vadd.f32 0.0, %v388
        %v390 = vpop.f32.mrf.mxu0
        %v391 = vpop.f32.mrf.mxu0
        %v392 = vpop.f32.mrf.mxu0
        %393 = vdwg.mxu0
        %v394 = vld [vmem:[%s336] sm:$0x3]
        %vm395 = vnez %v394
        %v396 = vsel %vm395, 16843009, 0
        %v397 = vunpack.c.0.s8 %v396
        %vm398 = vcmp.ne.s32.totalorder %v397, 0
        %v399 = vsel %vm398, -inf, %v389
        %vm400 = vcmask 64512
        %v401 = vsel %vm400, %v399, -inf
        %402 = vmax.xlane.f32.xlu0 %v401
        %v403 = vpop.xlane.xlu0 %402
        %v404 = vsub.f32 %v399, %v403
        %v405 = vpow.pop %v404
        %v406 = vsel %vm400, %v405, 0.0
        %407 = vadd.xlane.f32.xlu0 %v406
        %v408 = vpop.xlane.xlu0 %407
        %v409 = vrcp.pop %v408
        %v410 = vmul.f32 1.0, %v409
        %v411 = vmul.f32 %v405, %v410
        %v412 = vpack.c.bf16 %v411, %v411
        %v414 = vsel %vm400, %v412, 0
        %vm416 = vcmask 1043456
        %v418 = vsel %vm416, %v346, 0
        %420 = vmatprep.subr.bf16.mxu0 0
        %421 = vmatpush1.bf16.msra.mxu0 0
        %422 = vmatprep.subr.bf16.mxu0 0
        %423 = vmatpush1.bf16.msra.mxu0 0
        %424 = vmatprep.subr.bf16.mxu0 0
        %425 = vmatpush1.bf16.msra.mxu0 0
        %426 = vmatprep.subr.bf16.mxu0 0
        %427 = vmatpush1.bf16.msra.mxu0 0
        %428 = vmatprep.subr.bf16.mxu0 0
        %429 = vmatpush1.bf16.msra.mxu0 0
        %430 = vmatprep.subr.bf16.mxu0 0
        %431 = vmatpush1.bf16.msra.mxu0 0
        %432 = vmatprep.subr.bf16.mxu0 0
        %433 = vmatpush1.bf16.msra.mxu0 0
        %434 = vmatprep.subr.bf16.mxu0 0
        %435 = vmatpush1.bf16.msra.mxu0 %v418
        %436 = vmatprep.subr.bf16.mxu0 0
        %437 = vmatpush2.bf16.msra.mxu0 0
        %438 = vmatprep.subr.bf16.mxu0 0
        %439 = vmatpush2.bf16.msra.mxu0 0
        %440 = vmatprep.subr.bf16.mxu0 0
        %441 = vmatpush2.bf16.msra.mxu0 0
        %442 = vmatprep.subr.bf16.mxu0 0
        %443 = vmatpush2.bf16.msra.mxu0 0
        %444 = vmatprep.subr.bf16.mxu0 0
        %445 = vmatpush2.bf16.msra.mxu0 0
        %446 = vmatprep.subr.bf16.mxu0 0
        %447 = vmatpush2.bf16.msra.mxu0 0
        %448 = vmatprep.subr.bf16.mxu0 0
        %449 = vmatpush2.bf16.msra.mxu0 0
        %450 = vmatprep.subr.bf16.mxu0 0
        %451 = vmatpush2.bf16.msra.mxu0 0
        %452 = vmatprep.mubr.bf16.mxu0 0
        %453 = vmatmul.mubr.bf16.gmra.mxu0 %v414
        %v454 = vpop.f32.mrf.mxu0
        %v455 = vadd.f32 0.0, %v454
        %v456 = vpop.f32.mrf.mxu0
        %v457 = vpop.f32.mrf.mxu0
        %v458 = vpop.f32.mrf.mxu0
        %459 = vdwg.mxu0
        %460 = vst.msk [vmem:[%s322] sm:$0xff] %vm400, %v411
        %461 = vst.msk [vmem:[%s329] sm:$0xff] %vm347, %v455
        %s462 = sand.u32 %s157, 1
        %s463 = scalar_lea.sflag [#allocation4], %s462
        %s464 = sand.u32 %s157, 1
        %s465 = smul.addr %s464, 8
        %s466 = scalar_lea.vmem [#allocation8], %s465
        %s467 = sand.u32 %s185, 1
        %s468 = scalar_lea.sflag [#allocation10], %s467
        %s469 = sand.u32 %s185, 1
        %s470 = smul.addr %s469, 8
        %s471 = scalar_lea.vmem [#allocation9], %s470
        // Predicated region
        $region49: #{tpu_custom_call.1} parent=35 // pred_check
          %p472 = pneg %p167
        $region50: #{tpu_custom_call.1} parent=35 // pred_check_branch
          %474 = sbr.rel (%p472) target = $region52
        $region51: #{tpu_custom_call.1} parent=35 // pred_region
          %s476 = ssub.s32 128, 128
          %477 = vsyncadd %s463, %s476
          %s478 = sadd.s32 %s32, %s31
          %s479 = smul.addr %s478, 128
          %s480 = scalar_lea.hbm %s4, %s479
          %s482 = sshll.u32 %s466, 4
          %s483 = int_to_ptr.vmem [resolvable:$true] %s482
          %485 = dma.vmem_to_hbm [thread:$0]  %s483, 128, %s480, %s463
        $region52: #{tpu_custom_call.1} parent=35 // pred_fallthru
          _
        // Predicated region
        $region53: #{tpu_custom_call.1} parent=35 // pred_check
          %p486 = pneg %p195
        $region54: #{tpu_custom_call.1} parent=35 // pred_check_branch
          %488 = sbr.rel (%p486) target = $region56
        $region55: #{tpu_custom_call.1} parent=35 // pred_region
          %s490 = ssub.s32 128, 128
          %491 = vsyncadd %s468, %s490
          %s492 = sadd.s32 %s32, %s31
          %s493 = smul.addr %s492, 128
          %s494 = scalar_lea.hbm %s5, %s493
          %s496 = sshll.u32 %s471, 4
          %s497 = int_to_ptr.vmem [resolvable:$true] %s496
          %499 = dma.vmem_to_hbm [thread:$0]  %s497, 128, %s494, %s468
        $region56: #{tpu_custom_call.1} parent=35 // pred_fallthru
          _
      $region36: #{tpu_custom_call.1} parent=5 // pred_fallthru
        _
      %p500 = scmp.le.s32.totalorder 2, %s22
      // Predicated region
      $region57: #{tpu_custom_call.1} parent=5 // pred_check
        %p501 = pneg %p500
      $region58: #{tpu_custom_call.1} parent=5 // pred_check_branch
        %503 = sbr.rel (%p501) target = $region60
      $region59: #{tpu_custom_call.1} parent=5 // pred_region
        %s504 = ssub.s32 %s22, 2
        // Predicated region
        $region61: #{tpu_custom_call.1} parent=59 // pred_check
          %p505 = pneg %p173
        $region62: #{tpu_custom_call.1} parent=59 // pred_check_branch
          %507 = sbr.rel (%p505) target = $region64
        $region63: #{tpu_custom_call.1} parent=59 // pred_region
          %s508 = sand.u32 %s158, 1
          %s509 = scalar_lea.sflag [#allocation4], %s508
          %s510 = sand.u32 %s158, 1
          %s511 = smul.addr %s510, 8
          %s512 = scalar_lea.vmem [#allocation8], %s511
          %513 = dma.done %s509, 128
        $region64: #{tpu_custom_call.1} parent=59 // pred_fallthru
          _
        // Predicated region
        $region65: #{tpu_custom_call.1} parent=59 // pred_check
          %p514 = pneg %p201
        $region66: #{tpu_custom_call.1} parent=59 // pred_check_branch
          %516 = sbr.rel (%p514) target = $region68
        $region67: #{tpu_custom_call.1} parent=59 // pred_region
          %s517 = sand.u32 %s186, 1
          %s518 = scalar_lea.sflag [#allocation10], %s517
          %s519 = sand.u32 %s186, 1
          %s520 = smul.addr %s519, 8
          %s521 = scalar_lea.vmem [#allocation9], %s520
          %522 = dma.done %s518, 128
        $region68: #{tpu_custom_call.1} parent=59 // pred_fallthru
          _
      $region60: #{tpu_custom_call.1} parent=5 // pred_fallthru
        _
    $region6: #{tpu_custom_call.1} parent=1 // loop_footer
      %s26 = sadd.s32 1, %s22
    $region7: #{tpu_custom_call.1} parent=1 // loop_footer_branch
      %21 = sbr.rel target = $region3
    $region8: #{tpu_custom_call.1} parent=1 // loop_exit
      _
    %523 = vsyncpa [#allocation3], 1
    %s524 = scalar_lea.sflag [#allocation3], 1
    %525 = vsyncpa %s524, 1
    %526 = vsyncpa [#allocation6], 1
    %527 = vsyncpa [#allocation4], 1
    %s528 = scalar_lea.sflag [#allocation4], 1
    %529 = vsyncpa %s528, 1
    %530 = vsyncpa [#allocation10], 1
    %s531 = scalar_lea.sflag [#allocation10], 1
    %532 = vsyncpa %s531, 1

</llo_original>
